<compile_context>
chip_gen: v6e
topology: v6e:2x2x1
jax: 0.10.0
libtpu: 0.0.40
codegen_flags: <defaults>
</compile_context>

<pallas_src>
import numpy as np
import jax
import jax.numpy as jnp
from jax.experimental import pallas as pl
from jax.experimental.pallas import tpu as pltpu


def _round_up(x, m):
    return ((x + m - 1) // m) * m


def combiner_kernel(prelu_ref,     # SMEM (1,)        PReLU slope
                    z_ref,         # VMEM (TM, L*Z)   packed z_{t-1} rows
                    h_ref,         # VMEM (TM, R)     RNN hidden rows
                    fc1_w_ref,     # VMEM (L*Z, L*R)  block-diag(fc1_z)
                    fc1_b_ref,     # VMEM (1, L*R)    concat fc1_z_bias
                    w23t_ref,      # VMEM (L*R, 2Z)   tile([w2|w3], L) * 0.5/L
                    w23h_ref,      # VMEM (R, 2Z)     0.5 * [w2|w3]
                    b23_ref,       # VMEM (1, 2Z)     [b2|b3]
                    whead_ref,     # VMEM (2Z, OUT_W) blkdiag(w21,w31), lane-padded
                    bhead_ref,     # VMEM (1, OUT_W)  [b21|b31], lane-padded
                    out_ref):      # VMEM (TM, OUT_W) [loc || scale || 0-pad]
    a = prelu_ref[0]                      # read the SMEM scalar once

    def prelu(x):
        return jnp.where(x >= 0, x, a * x)

    # All L per-component fc1 matmuls fused into one MXU push against the
    # block-diagonal weight: [TM, L*Z] @ [L*Z, L*R] -> [TM, L*R]
    h1 = prelu(jnp.dot(z_ref[...], fc1_w_ref[...],
                       preferred_element_type=jnp.float32) + fc1_b_ref[...])
    hr = prelu(h_ref[...])                                            # [TM, R]

    # mean-over-L + 0.5 + 1/L folded into the tiled weight: the reduction
    # happens on the MXU (huge slack) instead of unaligned lane-slice adds.
    head = prelu(jnp.dot(h1, w23t_ref[...], preferred_element_type=jnp.float32)
                 + jnp.dot(hr, w23h_ref[...], preferred_element_type=jnp.float32)
                 + b23_ref[...])                                      # [TM, 2Z]

    # fused loc/scale head against the lane-padded block-diag weight -> the
    # output store is a full-lane (128-wide) unmasked vst.
    out = jnp.dot(head, whead_ref[...],
                  preferred_element_type=jnp.float32) + bhead_ref[...]
    out_ref[...] = out.astype(out_ref.dtype)


def pack_combiner_params(params):
    """Host-side, one-time packing of the PyTorch-style parameter list."""
    (prelu_a, fc1_w, fc1_b, w2, b2, w21, b21, w3, b3, w31, b31) = params
    L, Z, R = fc1_w.shape

    # block-diag fc1 so the L tiny matmuls fuse into one MXU push
    fc1_bd = jnp.zeros((L * Z, L * R), jnp.float32)
    for l in range(L):
        fc1_bd = fc1_bd.at[l * Z:(l + 1) * Z, l * R:(l + 1) * R].set(fc1_w[l])
    fc1_b_cat = fc1_b.reshape(1, L * R)             # [l*R + r] = fc1_b[l, 0, r]

    # second stage: [w2 | w3], with the 0.5*(mean_L + .) folded into the weights
    w23 = jnp.concatenate([w2, w3], axis=1)                       # [R, 2Z]
    w23_tiled = jnp.tile(w23, (L, 1)) * (0.5 / L)                 # [L*R, 2Z]
    w23_half = 0.5 * w23                                          # [R, 2Z]
    b23 = jnp.concatenate([b2, b3], axis=1)                       # [1, 2Z]

    # head: blkdiag(w21, w31), zero-padded to a lane-dense (multiple of 128) width
    out_w = _round_up(2 * Z, 128)
    whead_pad = jnp.zeros((2 * Z, out_w), jnp.float32)
    whead_pad = whead_pad.at[:Z, :Z].set(w21)
    whead_pad = whead_pad.at[Z:, Z:2 * Z].set(w31)
    bhead_pad = jnp.zeros((1, out_w), jnp.float32)
    bhead_pad = bhead_pad.at[:, :2 * Z].set(jnp.concatenate([b21, b31], axis=1))

    return (prelu_a, fc1_bd, fc1_b_cat, w23_tiled, w23_half, b23,
            whead_pad, bhead_pad)


def combiner_forward_batched(z_t_1, h_rnn, packed, row_tile=512):
    """z_t_1: [T, L, B, Z], h_rnn: [T, B, R] -> (loc [T,B,Z], scale [T,B,Z])."""
    (prelu_a, fc1_bd, fc1_b_cat, w23_tiled, w23_half, b23,
     whead_pad, bhead_pad) = packed
    T, L, B, Z = z_t_1.shape
    R = h_rnn.shape[-1]
    LZ, LR = fc1_bd.shape
    OUT_W = whead_pad.shape[-1]

    # layout plumbing (wrapper side, fused by XLA at these sizes):
    # [T, L, B, Z] -> [T*B, L*Z], [T, B, R] -> [T*B, R]
    z2 = jnp.transpose(z_t_1, (0, 2, 1, 3)).reshape(T * B, L * Z)
    h2 = h_rnn.reshape(T * B, R)

    rows = T * B
    tm = min(row_tile, _round_up(rows, 8))          # large row tiles (mult. of 8)
    rows_p = _round_up(rows, tm)
    if rows_p != rows:
        z2 = jnp.pad(z2, ((0, rows_p - rows), (0, 0)))
        h2 = jnp.pad(h2, ((0, rows_p - rows), (0, 0)))

    const = lambda i: (0, 0)     # weights: same block every step -> VMEM-resident

    grid_spec = pltpu.PrefetchScalarGridSpec(
        num_scalar_prefetch=0,
        grid=(rows_p // tm,),
        in_specs=[
            pl.BlockSpec(memory_space=pltpu.MemorySpace.SMEM),   # PReLU slope
            pl.BlockSpec((tm, LZ), lambda i: (i, 0)),            # z rows (pipelined)
            pl.BlockSpec((tm, R), lambda i: (i, 0)),             # h_rnn rows
            pl.BlockSpec((LZ, LR), const),                       # block-diag fc1
            pl.BlockSpec((1, LR), const),                        # fc1 bias
            pl.BlockSpec((LR, 2 * Z), const),                    # tiled [w2|w3]
            pl.BlockSpec((R, 2 * Z), const),                     # 0.5*[w2|w3]
            pl.BlockSpec((1, 2 * Z), const),                     # [b2|b3]
            pl.BlockSpec((2 * Z, OUT_W), const),                 # blkdiag(w21,w31)
            pl.BlockSpec((1, OUT_W), const),                     # [b21|b31]
        ],
        out_specs=pl.BlockSpec((tm, OUT_W), lambda i: (i, 0)),
    )

    flops = 2 * rows_p * (LZ * LR + LR * 2 * Z + R * 2 * Z + 2 * Z * OUT_W)
    bytes_accessed = 4 * (z2.size + h2.size + rows_p * OUT_W + fc1_bd.size
                          + fc1_b_cat.size + w23_tiled.size + w23_half.size
                          + b23.size + whead_pad.size + bhead_pad.size)

    out = pl.pallas_call(
        combiner_kernel,
        out_shape=jax.ShapeDtypeStruct((rows_p, OUT_W), jnp.float32),
        grid_spec=grid_spec,
        compiler_params=pltpu.CompilerParams(
            # row tiles are independent -> shard across TCs when grid > 1 (v7x)
            dimension_semantics=("parallel",)),
        cost_estimate=pl.CostEstimate(flops=flops, transcendentals=0,
                                      bytes_accessed=bytes_accessed),
    )(prelu_a, z2, h2, fc1_bd, fc1_b_cat, w23_tiled, w23_half, b23,
      whead_pad, bhead_pad)

    out = out[:rows, :2 * Z].reshape(T, B, 2 * Z)
    return out[..., :Z], out[..., Z:]


def combiner_forward(z_t_1, h_rnn, packed):
    """Single-step interface matching the original module's forward()."""
    loc, scale = combiner_forward_batched(z_t_1[None], h_rnn[None], packed)
    return loc[0], scale[0]


def init_params(key, z_dim, rnn_dim, L):
    """Deterministic init matching the PyTorch module's __init__ recipes."""
    ks = jax.random.split(key, 10)

    # FC([L, z_dim, rnn_dim]):  uniform(-1,1) * sqrt(1/z_dim)
    s1 = np.sqrt(1.0 / z_dim)
    fc1_w = (jax.random.uniform(ks[0], (L, z_dim, rnn_dim),
                                minval=-1.0, maxval=1.0) * s1).astype(jnp.float32)
    fc1_b = (jax.random.uniform(ks[1], (L, 1, rnn_dim),
                                minval=-1.0, maxval=1.0) * s1).astype(jnp.float32)

    def linear(kw, kb, fan_in, fan_out):
        # nn.Linear default: U(-1/sqrt(fan_in), 1/sqrt(fan_in)); stored as [in, out]
        bound = 1.0 / np.sqrt(fan_in)
        w = jax.random.uniform(kw, (fan_in, fan_out),
                               minval=-bound, maxval=bound).astype(jnp.float32)
        b = jax.random.uniform(kb, (1, fan_out),
                               minval=-bound, maxval=bound).astype(jnp.float32)
        return w, b

    w2, b2 = linear(ks[2], ks[3], rnn_dim, z_dim)    # fc2_z
    w21, b21 = linear(ks[4], ks[5], z_dim, z_dim)    # fc21_z
    w3, b3 = linear(ks[6], ks[7], rnn_dim, z_dim)    # fc3_z
    w31, b31 = linear(ks[8], ks[9], z_dim, z_dim)    # fc31_z

    prelu_a = jnp.array([0.25], dtype=jnp.float32)   # nn.PReLU() default
    return (prelu_a, fc1_w, fc1_b, w2, b2, w21, b21, w3, b3, w31, b31)


def combiner_reference(z_t_1, h_rnn, params):
    """Pure-JAX single-step reference mirroring the PyTorch forward."""
    (a, fc1_w, fc1_b, w2, b2, w21, b21, w3, b3, w31, b31) = params
    prelu = lambda x: jnp.where(x >= 0, x, a[0] * x)
    h = jnp.einsum('lbz,lzr->lbr', z_t_1, fc1_w) + fc1_b
    h_combined = 0.5 * (prelu(h).mean(axis=0) + prelu(h_rnn))
    loc = prelu(h_combined @ w2 + b2)
    loc = loc @ w21 + b21
    scale = prelu(h_combined @ w3 + b3)
    scale = scale @ w31 + b31
    return loc, scale


if __name__ == "__main__":
    T, L, B, z_dim, rnn_dim = 6, 4, 8, 16, 32

    key = jax.random.PRNGKey(0)
    k_z, k_h, k_p = jax.random.split(key, 3)

    z_seq = jax.random.normal(k_z, (T, L, B, z_dim), dtype=jnp.float32)
    h_seq = jax.random.normal(k_h, (T, B, rnn_dim), dtype=jnp.float32)
    params = init_params(k_p, z_dim, rnn_dim, L)
    packed = pack_combiner_params(params)

    # row-batched kernel (weights VMEM-resident across the grid)
    loc, scale = jax.jit(combiner_forward_batched)(z_seq, h_seq, packed)
    jax.block_until_ready((loc, scale))

    ref_loc, ref_scale = jax.vmap(
        lambda z, h: combiner_reference(z, h, params))(z_seq, h_seq)

    assert loc.shape == (T, B, z_dim) and scale.shape == (T, B, z_dim)
    np.testing.assert_allclose(np.asarray(loc), np.asarray(ref_loc),
                               rtol=1e-5, atol=1e-5)
    np.testing.assert_allclose(np.asarray(scale), np.asarray(ref_scale),
                               rtol=1e-5, atol=1e-5)

    # exercise multi-block grid + row padding with a smaller row tile
    loc2, scale2 = jax.jit(
        lambda z, h: combiner_forward_batched(z, h, packed, row_tile=16)
    )(z_seq, h_seq)
    jax.block_until_ready((loc2, scale2))
    np.testing.assert_allclose(np.asarray(loc2), np.asarray(ref_loc),
                               rtol=1e-5, atol=1e-5)
    np.testing.assert_allclose(np.asarray(scale2), np.asarray(ref_scale),
                               rtol=1e-5, atol=1e-5)

    # single-step API (matches the original module's forward signature)
    loc1, scale1 = combiner_forward(z_seq[0], h_seq[0], packed)
    jax.block_until_ready((loc1, scale1))
    np.testing.assert_allclose(np.asarray(loc1), np.asarray(ref_loc[0]),
                               rtol=1e-5, atol=1e-5)
    np.testing.assert_allclose(np.asarray(scale1), np.asarray(ref_scale[0]),
                               rtol=1e-5, atol=1e-5)

    print("KERNEL_OK")
</pallas_src>

<mosaic_0001>
module attributes {stable_mosaic.version = 11 : i64} {
  func.func @combiner_kernel(%arg0: i32, %arg1: memref<1xf32, #tpu.memory_space<smem>>, %arg2: memref<48x64xf32, #tpu.memory_space<vmem>>, %arg3: memref<48x32xf32, #tpu.memory_space<vmem>>, %arg4: memref<64x128xf32, #tpu.memory_space<vmem>>, %arg5: memref<1x128xf32, #tpu.memory_space<vmem>>, %arg6: memref<128x32xf32, #tpu.memory_space<vmem>>, %arg7: memref<32x32xf32, #tpu.memory_space<vmem>>, %arg8: memref<1x32xf32, #tpu.memory_space<vmem>>, %arg9: memref<32x128xf32, #tpu.memory_space<vmem>>, %arg10: memref<1x128xf32, #tpu.memory_space<vmem>>, %arg11: memref<48x128xf32, #tpu.memory_space<vmem>>) attributes {dimension_semantics = [#tpu.dimension_semantics<parallel>], iteration_bounds = array<i64: 1>, scalar_prefetch = 0 : i64, scratch_operands = 0 : i64, tpu.core_type = #tpu.core_type<tc>, window_params = [{transform_indices = @transform_0, window_bounds = array<i64: 1>}, {transform_indices = @transform_1, window_bounds = array<i64: 48, 64>}, {transform_indices = @transform_2, window_bounds = array<i64: 48, 32>}, {pipeline_mode = #tpu.pipeline_mode<synchronous>, transform_indices = @transform_3, window_bounds = array<i64: 64, 128>}, {pipeline_mode = #tpu.pipeline_mode<synchronous>, transform_indices = @transform_4, window_bounds = array<i64: 1, 128>}, {pipeline_mode = #tpu.pipeline_mode<synchronous>, transform_indices = @transform_5, window_bounds = array<i64: 128, 32>}, {pipeline_mode = #tpu.pipeline_mode<synchronous>, transform_indices = @transform_6, window_bounds = array<i64: 32, 32>}, {pipeline_mode = #tpu.pipeline_mode<synchronous>, transform_indices = @transform_7, window_bounds = array<i64: 1, 32>}, {pipeline_mode = #tpu.pipeline_mode<synchronous>, transform_indices = @transform_8, window_bounds = array<i64: 32, 128>}, {pipeline_mode = #tpu.pipeline_mode<synchronous>, transform_indices = @transform_9, window_bounds = array<i64: 1, 128>}, {transform_indices = @transform_10, window_bounds = array<i64: 48, 128>}]} {
    %c0 = arith.constant 0 : index
    %0 = memref.load %arg1[%c0] : memref<1xf32, #tpu.memory_space<smem>>
    %c0_0 = arith.constant 0 : index
    %c0_1 = arith.constant 0 : index
    %1 = vector.load %arg2[%c0_0, %c0_1] : memref<48x64xf32, #tpu.memory_space<vmem>>, vector<48x64xf32>
    %c0_2 = arith.constant 0 : index
    %c0_3 = arith.constant 0 : index
    %2 = vector.load %arg4[%c0_2, %c0_3] : memref<64x128xf32, #tpu.memory_space<vmem>>, vector<64x128xf32>
    %cst = arith.constant dense<0.000000e+00> : vector<48x128xf32>
    %3 = tpu.matmul %1, %2, %cst {dimension_numbers = #tpu.dot_dimension_numbers<[1], [0], [0], [1], [0, 0, 1, 1], [], []>} : vector<48x64xf32>, vector<64x128xf32>, vector<48x128xf32> -> vector<48x128xf32>
    %c0_4 = arith.constant 0 : index
    %c0_5 = arith.constant 0 : index
    %4 = vector.load %arg5[%c0_4, %c0_5] : memref<1x128xf32, #tpu.memory_space<vmem>>, vector<1x128xf32>
    %5 = vector.broadcast %4 : vector<1x128xf32> to vector<48x128xf32>
    %6 = arith.addf %3, %5 : vector<48x128xf32>
    %cst_6 = arith.constant 0.000000e+00 : f32
    %7 = vector.broadcast %cst_6 : f32 to vector<48x128xf32>
    %8 = arith.cmpf oge, %6, %7 : vector<48x128xf32>
    %9 = vector.broadcast %0 : f32 to vector<48x128xf32>
    %10 = arith.mulf %9, %6 : vector<48x128xf32>
    %11 = arith.select %8, %6, %10 : vector<48x128xi1>, vector<48x128xf32>
    %c0_7 = arith.constant 0 : index
    %c0_8 = arith.constant 0 : index
    %12 = vector.load %arg3[%c0_7, %c0_8] : memref<48x32xf32, #tpu.memory_space<vmem>>, vector<48x32xf32>
    %cst_9 = arith.constant 0.000000e+00 : f32
    %13 = vector.broadcast %cst_9 : f32 to vector<48x32xf32>
    %14 = arith.cmpf oge, %12, %13 : vector<48x32xf32>
    %15 = vector.broadcast %0 : f32 to vector<48x32xf32>
    %16 = arith.mulf %15, %12 : vector<48x32xf32>
    %17 = arith.select %14, %12, %16 : vector<48x32xi1>, vector<48x32xf32>
    %c0_10 = arith.constant 0 : index
    %c0_11 = arith.constant 0 : index
    %18 = vector.load %arg6[%c0_10, %c0_11] : memref<128x32xf32, #tpu.memory_space<vmem>>, vector<128x32xf32>
    %cst_12 = arith.constant dense<0.000000e+00> : vector<48x32xf32>
    %19 = tpu.matmul %11, %18, %cst_12 {dimension_numbers = #tpu.dot_dimension_numbers<[1], [0], [0], [1], [0, 0, 1, 1], [], []>} : vector<48x128xf32>, vector<128x32xf32>, vector<48x32xf32> -> vector<48x32xf32>
    %c0_13 = arith.constant 0 : index
    %c0_14 = arith.constant 0 : index
    %20 = vector.load %arg7[%c0_13, %c0_14] : memref<32x32xf32, #tpu.memory_space<vmem>>, vector<32x32xf32>
    %cst_15 = arith.constant dense<0.000000e+00> : vector<48x32xf32>
    %21 = tpu.matmul %17, %20, %cst_15 {dimension_numbers = #tpu.dot_dimension_numbers<[1], [0], [0], [1], [0, 0, 1, 1], [], []>} : vector<48x32xf32>, vector<32x32xf32>, vector<48x32xf32> -> vector<48x32xf32>
    %22 = arith.addf %19, %21 : vector<48x32xf32>
    %c0_16 = arith.constant 0 : index
    %c0_17 = arith.constant 0 : index
    %23 = vector.load %arg8[%c0_16, %c0_17] : memref<1x32xf32, #tpu.memory_space<vmem>>, vector<1x32xf32>
    %24 = vector.broadcast %23 : vector<1x32xf32> to vector<48x32xf32>
    %25 = arith.addf %22, %24 : vector<48x32xf32>
    %cst_18 = arith.constant 0.000000e+00 : f32
    %26 = vector.broadcast %cst_18 : f32 to vector<48x32xf32>
    %27 = arith.cmpf oge, %25, %26 : vector<48x32xf32>
    %28 = vector.broadcast %0 : f32 to vector<48x32xf32>
    %29 = arith.mulf %28, %25 : vector<48x32xf32>
    %30 = arith.select %27, %25, %29 : vector<48x32xi1>, vector<48x32xf32>
    %c0_19 = arith.constant 0 : index
    %c0_20 = arith.constant 0 : index
    %31 = vector.load %arg9[%c0_19, %c0_20] : memref<32x128xf32, #tpu.memory_space<vmem>>, vector<32x128xf32>
    %cst_21 = arith.constant dense<0.000000e+00> : vector<48x128xf32>
    %32 = tpu.matmul %30, %31, %cst_21 {dimension_numbers = #tpu.dot_dimension_numbers<[1], [0], [0], [1], [0, 0, 1, 1], [], []>} : vector<48x32xf32>, vector<32x128xf32>, vector<48x128xf32> -> vector<48x128xf32>
    %c0_22 = arith.constant 0 : index
    %c0_23 = arith.constant 0 : index
    %33 = vector.load %arg10[%c0_22, %c0_23] : memref<1x128xf32, #tpu.memory_space<vmem>>, vector<1x128xf32>
    %34 = vector.broadcast %33 : vector<1x128xf32> to vector<48x128xf32>
    %35 = arith.addf %32, %34 : vector<48x128xf32>
    %c0_24 = arith.constant 0 : index
    %c0_25 = arith.constant 0 : index
    %36 = vector.load %arg11[%c0_24, %c0_25] : memref<48x128xf32, #tpu.memory_space<vmem>>, vector<48x128xf32>
    tpu.vector_store %arg11[%c0_24, %c0_25], %35 {strides = array<i32>} : memref<48x128xf32, #tpu.memory_space<vmem>>, vector<48x128xf32>,
    return
  }
  func.func @transform_0(%arg0: i32) -> i32 {
    %c0_i32 = arith.constant 0 : i32
    %c0_i32_0 = arith.constant 0 : i32
    return %c0_i32 : i32
  }
  func.func @transform_1(%arg0: i32) -> (i32, i32) {
    %c0_i32 = arith.constant 0 : i32
    %c0_i32_0 = arith.constant 0 : i32
    return %arg0, %c0_i32 : i32, i32
  }
  func.func @transform_2(%arg0: i32) -> (i32, i32) {
    %c0_i32 = arith.constant 0 : i32
    %c0_i32_0 = arith.constant 0 : i32
    return %arg0, %c0_i32 : i32, i32
  }
  func.func @transform_3(%arg0: i32) -> (i32, i32) {
    %c0_i32 = arith.constant 0 : i32
    %c0_i32_0 = arith.constant 0 : i32
    %c0_i32_1 = arith.constant 0 : i32
    return %c0_i32, %c0_i32_0 : i32, i32
  }
  func.func @transform_4(%arg0: i32) -> (i32, i32) {
    %c0_i32 = arith.constant 0 : i32
    %c0_i32_0 = arith.constant 0 : i32
    %c0_i32_1 = arith.constant 0 : i32
    return %c0_i32, %c0_i32_0 : i32, i32
  }
  func.func @transform_5(%arg0: i32) -> (i32, i32) {
    %c0_i32 = arith.constant 0 : i32
    %c0_i32_0 = arith.constant 0 : i32
    %c0_i32_1 = arith.constant 0 : i32
    return %c0_i32, %c0_i32_0 : i32, i32
  }
  func.func @transform_6(%arg0: i32) -> (i32, i32) {
    %c0_i32 = arith.constant 0 : i32
    %c0_i32_0 = arith.constant 0 : i32
    %c0_i32_1 = arith.constant 0 : i32
    return %c0_i32, %c0_i32_0 : i32, i32
  }
  func.func @transform_7(%arg0: i32) -> (i32, i32) {
    %c0_i32 = arith.constant 0 : i32
    %c0_i32_0 = arith.constant 0 : i32
    %c0_i32_1 = arith.constant 0 : i32
    return %c0_i32, %c0_i32_0 : i32, i32
  }
  func.func @transform_8(%arg0: i32) -> (i32, i32) {
    %c0_i32 = arith.constant 0 : i32
    %c0_i32_0 = arith.constant 0 : i32
    %c0_i32_1 = arith.constant 0 : i32
    return %c0_i32, %c0_i32_0 : i32, i32
  }
  func.func @transform_9(%arg0: i32) -> (i32, i32) {
    %c0_i32 = arith.constant 0 : i32
    %c0_i32_0 = arith.constant 0 : i32
    %c0_i32_1 = arith.constant 0 : i32
    return %c0_i32, %c0_i32_0 : i32, i32
  }
  func.func @transform_10(%arg0: i32) -> (i32, i32) {
    %c0_i32 = arith.constant 0 : i32
    %c0_i32_0 = arith.constant 0 : i32
    return %arg0, %c0_i32 : i32, i32
  }
}

</mosaic_0001>

<llo_original>
// kernel: combiner_forward_batched.1
$region0: #{combiner_forward_batched.1}
  #allocation0 [shape = 'u32[]', space=smem, size = 0x4, offset = 0x4, fixed_abs, tag = 'smem constant byte address 0x4 - core index']
  #allocation1 [shape = 'u32[144,128]{1,0:T(1,128)}', space=vmem, size = 0x12000, scoped, tag = 'internal scratch']
  #allocation2 [shape = 'f32[1]{0:T(128)S(6)}', space=smem, size = 0x200, scoped, tag = 'scoped memory for combiner_forward_batched.1']
  %s0 = inlined_call_operand.<no memory space> [shape: f32[1], index: 0, kind: input, shape index: {}]
  %s1 = inlined_call_operand.vmem [shape: f32[48,64], index: 1, kind: input, shape index: {}]
  %s2 = inlined_call_operand.vmem [shape: f32[48,32], index: 2, kind: input, shape index: {}]
  %s3 = inlined_call_operand.vmem [shape: f32[64,128], index: 3, kind: input, shape index: {}]
  %s4 = inlined_call_operand.vmem [shape: f32[1,128], index: 4, kind: input, shape index: {}]
  %s5 = inlined_call_operand.vmem [shape: f32[128,32], index: 5, kind: input, shape index: {}]
  %s6 = inlined_call_operand.vmem [shape: f32[32,32], index: 6, kind: input, shape index: {}]
  %s7 = inlined_call_operand.vmem [shape: f32[1,32], index: 7, kind: input, shape index: {}]
  %s8 = inlined_call_operand.vmem [shape: f32[32,128], index: 8, kind: input, shape index: {}]
  %s9 = inlined_call_operand.vmem [shape: f32[1,128], index: 9, kind: input, shape index: {}]
  %s10 = inlined_call_operand.vmem [shape: f32[48,128], index: 10, kind: output, shape index: {}]
  %s11 = sld [smem:[#allocation0]]
  $region50: #{combiner_forward_batched.1} parent=0
    _
  %s13 = ssub.s32 1, %s11
  %s14 = scalar_select 0, %s13, %s11
  %15 = sst [smem:[#allocation2]] %s0
  // Predicated region
  $region2: #{combiner_forward_batched.1} parent=0 // pred_check
    _
  $region3: #{combiner_forward_batched.1} parent=0 // pred_check_branch
    %17 = sbr.rel (0) target = $region5
  $region4: #{combiner_forward_batched.1} parent=0 // pred_region
    _
  $region5: #{combiner_forward_batched.1} parent=0 // pred_fallthru
    _
  // Predicated region
  $region6: #{combiner_forward_batched.1} parent=0 // pred_check
    _
  $region7: #{combiner_forward_batched.1} parent=0 // pred_check_branch
    %19 = sbr.rel (0) target = $region9
  $region8: #{combiner_forward_batched.1} parent=0 // pred_region
    _
  $region9: #{combiner_forward_batched.1} parent=0 // pred_fallthru
    _
  // Predicated region
  $region10: #{combiner_forward_batched.1} parent=0 // pred_check
    _
  $region11: #{combiner_forward_batched.1} parent=0 // pred_check_branch
    %21 = sbr.rel (0) target = $region13
  $region12: #{combiner_forward_batched.1} parent=0 // pred_region
    _
  $region13: #{combiner_forward_batched.1} parent=0 // pred_fallthru
    _
  // Predicated region
  $region14: #{combiner_forward_batched.1} parent=0 // pred_check
    _
  $region15: #{combiner_forward_batched.1} parent=0 // pred_check_branch
    %23 = sbr.rel (0) target = $region17
  $region16: #{combiner_forward_batched.1} parent=0 // pred_region
    _
  $region17: #{combiner_forward_batched.1} parent=0 // pred_fallthru
    _
  // Predicated region
  $region18: #{combiner_forward_batched.1} parent=0 // pred_check
    _
  $region19: #{combiner_forward_batched.1} parent=0 // pred_check_branch
    %25 = sbr.rel (0) target = $region21
  $region20: #{combiner_forward_batched.1} parent=0 // pred_region
    _
  $region21: #{combiner_forward_batched.1} parent=0 // pred_fallthru
    _
  // Predicated region
  $region22: #{combiner_forward_batched.1} parent=0 // pred_check
    _
  $region23: #{combiner_forward_batched.1} parent=0 // pred_check_branch
    %27 = sbr.rel (0) target = $region25
  $region24: #{combiner_forward_batched.1} parent=0 // pred_region
    _
  $region25: #{combiner_forward_batched.1} parent=0 // pred_fallthru
    _
  // Predicated region
  $region26: #{combiner_forward_batched.1} parent=0 // pred_check
    _
  $region27: #{combiner_forward_batched.1} parent=0 // pred_check_branch
    %29 = sbr.rel (0) target = $region29
  $region28: #{combiner_forward_batched.1} parent=0 // pred_region
    _
  $region29: #{combiner_forward_batched.1} parent=0 // pred_fallthru
    _
  // Predicated region
  $region30: #{combiner_forward_batched.1} parent=0 // pred_check
    _
  $region31: #{combiner_forward_batched.1} parent=0 // pred_check_branch
    %31 = sbr.rel (0) target = $region33
  $region32: #{combiner_forward_batched.1} parent=0 // pred_region
    _
  $region33: #{combiner_forward_batched.1} parent=0 // pred_fallthru
    _
  // Predicated region
  $region34: #{combiner_forward_batched.1} parent=0 // pred_check
    _
  $region35: #{combiner_forward_batched.1} parent=0 // pred_check_branch
    %33 = sbr.rel (0) target = $region37
  $region36: #{combiner_forward_batched.1} parent=0 // pred_region
    _
  $region37: #{combiner_forward_batched.1} parent=0 // pred_fallthru
    _
  // Predicated region
  $region38: #{combiner_forward_batched.1} parent=0 // pred_check
    _
  $region39: #{combiner_forward_batched.1} parent=0 // pred_check_branch
    %35 = sbr.rel (0) target = $region41
  $region40: #{combiner_forward_batched.1} parent=0 // pred_region
    _
  $region41: #{combiner_forward_batched.1} parent=0 // pred_fallthru
    _
  %s36 = sld [smem:[#allocation2]]
  %v37 = vld [vmem:[%s1] sm:$0xff]
  %v38 = vld [vmem:[%s1 + $0x8] sm:$0xff]
  %v39 = vld [vmem:[%s1 + $0x10] sm:$0xff]
  %v40 = vld [vmem:[%s1 + $0x18] sm:$0xff]
  %v41 = vld [vmem:[%s1 + $0x20] sm:$0xff]
  %v42 = vld [vmem:[%s1 + $0x28] sm:$0xff]
  %v43 = vld [vmem:[%s3] sm:$0xff]
  %v44 = vld [vmem:[%s3 + $0x8] sm:$0xff]
  %v45 = vld [vmem:[%s3 + $0x10] sm:$0xff]
  %v46 = vld [vmem:[%s3 + $0x18] sm:$0xff]
  %v47 = vld [vmem:[%s3 + $0x20] sm:$0xff]
  %v48 = vld [vmem:[%s3 + $0x28] sm:$0xff]
  %v49 = vld [vmem:[%s3 + $0x30] sm:$0xff]
  %v50 = vld [vmem:[%s3 + $0x38] sm:$0xff]
  %v51 = vld [vmem:[%s4] sm:$0x1]
  %v53 = vlaneseq
  %v54 = vshrl.u32 %v53, 7
  %v55 = vsub.s32 0, %v54
  %v56 = vrot.slane %v51, %v55
  %vm58 = vcmask 523264
  %v60 = vsel %vm58, %v37, 0
  %v63 = vsel %vm58, %v38, 0
  %v66 = vsel %vm58, %v39, 0
  %v69 = vsel %vm58, %v40, 0
  %v72 = vsel %vm58, %v41, 0
  %v75 = vsel %vm58, %v42, 0
  %77 = vmatprep.subr.mxu0 0.0
  %78 = vmatpush1.msra.mxu0 0.0
  %79 = vmatprep.subr.mxu0 0.0
  %80 = vmatpush1.msra.mxu0 0.0
  %81 = vmatprep.subr.mxu0 0.0
  %82 = vmatpush1.msra.mxu0 0.0
  %83 = vmatprep.subr.mxu0 0.0
  %84 = vmatpush1.msra.mxu0 0.0
  %85 = vmatprep.subr.mxu0 0.0
  %86 = vmatpush1.msra.mxu0 0.0
  %87 = vmatprep.subr.mxu0 0.0
  %88 = vmatpush1.msra.mxu0 0.0
  %89 = vmatprep.subr.mxu0 0.0
  %90 = vmatpush1.msra.mxu0 0.0
  %91 = vmatprep.subr.mxu0 0.0
  %92 = vmatpush1.msra.mxu0 0.0
  %93 = vmatprep.subr.mxu0 0.0
  %94 = vmatpush1.msra.mxu0 %v50
  %95 = vmatprep.subr.mxu0 0.0
  %96 = vmatpush1.msra.mxu0 %v49
  %97 = vmatprep.subr.mxu0 0.0
  %98 = vmatpush1.msra.mxu0 %v48
  %99 = vmatprep.subr.mxu0 0.0
  %100 = vmatpush1.msra.mxu0 %v47
  %101 = vmatprep.subr.mxu0 0.0
  %102 = vmatpush1.msra.mxu0 %v46
  %103 = vmatprep.subr.mxu0 0.0
  %104 = vmatpush1.msra.mxu0 %v45
  %105 = vmatprep.subr.mxu0 0.0
  %106 = vmatpush1.msra.mxu0 %v44
  %107 = vmatprep.subr.mxu0 0.0
  %108 = vmatpush1.msra.mxu0 %v43
  %109 = vmatprep.subr.mxu0 0.0
  %110 = vmatpush2.msra.mxu0 0.0
  %111 = vmatprep.subr.mxu0 0.0
  %112 = vmatpush2.msra.mxu0 0.0
  %113 = vmatprep.subr.mxu0 0.0
  %114 = vmatpush2.msra.mxu0 0.0
  %115 = vmatprep.subr.mxu0 0.0
  %116 = vmatpush2.msra.mxu0 0.0
  %117 = vmatprep.subr.mxu0 0.0
  %118 = vmatpush2.msra.mxu0 0.0
  %119 = vmatprep.subr.mxu0 0.0
  %120 = vmatpush2.msra.mxu0 0.0
  %121 = vmatprep.subr.mxu0 0.0
  %122 = vmatpush2.msra.mxu0 0.0
  %123 = vmatprep.subr.mxu0 0.0
  %124 = vmatpush2.msra.mxu0 0.0
  %125 = vmatprep.subr.mxu0 0.0
  %126 = vmatpush2.msra.mxu0 0.0
  %127 = vmatprep.subr.mxu0 0.0
  %128 = vmatpush2.msra.mxu0 0.0
  %129 = vmatprep.subr.mxu0 0.0
  %130 = vmatpush2.msra.mxu0 0.0
  %131 = vmatprep.subr.mxu0 0.0
  %132 = vmatpush2.msra.mxu0 0.0
  %133 = vmatprep.subr.mxu0 0.0
  %134 = vmatpush2.msra.mxu0 0.0
  %135 = vmatprep.subr.mxu0 0.0
  %136 = vmatpush2.msra.mxu0 0.0
  %137 = vmatprep.subr.mxu0 0.0
  %138 = vmatpush2.msra.mxu0 0.0
  %139 = vmatprep.subr.mxu0 0.0
  %140 = vmatpush2.msra.mxu0 0.0
  %141 = vmatprep.mubr.f32.mxu0 0.0
  %142 = vmatmul.mubr.f32.gmra.mxu0 %v60
  %v143 = vpop.f32.mrf.mxu0
  %v144 = vadd.f32 %v56, %v143
  %v145 = vpop.f32.mrf.mxu0
  %146 = vmatprep.mubr.f32.mxu0 0.0
  %147 = vmatmul.mubr.f32.gmra.mxu0 %v63
  %v148 = vpop.f32.mrf.mxu0
  %v149 = vadd.f32 %v56, %v148
  %v150 = vpop.f32.mrf.mxu0
  %151 = vmatprep.mubr.f32.mxu0 0.0
  %152 = vmatmul.mubr.f32.gmra.mxu0 %v66
  %v153 = vpop.f32.mrf.mxu0
  %v154 = vadd.f32 %v56, %v153
  %v155 = vpop.f32.mrf.mxu0
  %156 = vmatprep.mubr.f32.mxu0 0.0
  %157 = vmatmul.mubr.f32.gmra.mxu0 %v69
  %v158 = vpop.f32.mrf.mxu0
  %v159 = vadd.f32 %v56, %v158
  %v160 = vpop.f32.mrf.mxu0
  %161 = vmatprep.mubr.f32.mxu0 0.0
  %162 = vmatmul.mubr.f32.gmra.mxu0 %v72
  %v163 = vpop.f32.mrf.mxu0
  %v164 = vadd.f32 %v56, %v163
  %v165 = vpop.f32.mrf.mxu0
  %166 = vmatprep.mubr.f32.mxu0 0.0
  %167 = vmatmul.mubr.f32.gmra.mxu0 %v75
  %v168 = vpop.f32.mrf.mxu0
  %v169 = vadd.f32 %v56, %v168
  %v170 = vpop.f32.mrf.mxu0
  %171 = vdwg.mxu0
  %vm172 = vcmp.ge.f32.partialorder %v144, 0.0
  %vm173 = vcmp.ge.f32.partialorder %v149, 0.0
  %vm174 = vcmp.ge.f32.partialorder %v154, 0.0
  %vm175 = vcmp.ge.f32.partialorder %v159, 0.0
  %vm176 = vcmp.ge.f32.partialorder %v164, 0.0
  %vm177 = vcmp.ge.f32.partialorder %v169, 0.0
  %v178 = vstv %s36
  %v179 = vmul.f32 %v178, %v144
  %v180 = vmul.f32 %v178, %v149
  %v181 = vmul.f32 %v178, %v154
  %v182 = vmul.f32 %v178, %v159
  %v183 = vmul.f32 %v178, %v164
  %v184 = vmul.f32 %v178, %v169
  %v185 = vsel %vm172, %v144, %v179
  %v186 = vsel %vm173, %v149, %v180
  %v187 = vsel %vm174, %v154, %v181
  %v188 = vsel %vm175, %v159, %v182
  %v189 = vsel %vm176, %v164, %v183
  %v190 = vsel %vm177, %v169, %v184
  %v191 = vld [vmem:[%s2] sm:$0xff]
  %v192 = vld [vmem:[%s2 + $0x8] sm:$0xff]
  %v193 = vld [vmem:[%s2 + $0x10] sm:$0xff]
  %v194 = vld [vmem:[%s2 + $0x18] sm:$0xff]
  %v195 = vld [vmem:[%s2 + $0x20] sm:$0xff]
  %v196 = vld [vmem:[%s2 + $0x28] sm:$0xff]
  %vm197 = vcmp.ge.f32.partialorder %v191, 0.0
  %vm198 = vcmp.ge.f32.partialorder %v192, 0.0
  %vm199 = vcmp.ge.f32.partialorder %v193, 0.0
  %vm200 = vcmp.ge.f32.partialorder %v194, 0.0
  %vm201 = vcmp.ge.f32.partialorder %v195, 0.0
  %vm202 = vcmp.ge.f32.partialorder %v196, 0.0
  %v203 = vmul.f32 %v178, %v191
  %v204 = vmul.f32 %v178, %v192
  %v205 = vmul.f32 %v178, %v193
  %v206 = vmul.f32 %v178, %v194
  %v207 = vmul.f32 %v178, %v195
  %v208 = vmul.f32 %v178, %v196
  %v209 = vsel %vm197, %v191, %v203
  %v210 = vsel %vm198, %v192, %v204
  %v211 = vsel %vm199, %v193, %v205
  %v212 = vsel %vm200, %v194, %v206
  %v213 = vsel %vm201, %v195, %v207
  %v214 = vsel %vm202, %v196, %v208
  %v215 = vld [vmem:[%s5] sm:$0xff]
  %v216 = vld [vmem:[%s5 + $0x8] sm:$0xff]
  %v217 = vld [vmem:[%s5 + $0x10] sm:$0xff]
  %v218 = vld [vmem:[%s5 + $0x18] sm:$0xff]
  %v219 = vld [vmem:[%s5 + $0x20] sm:$0xff]
  %v220 = vld [vmem:[%s5 + $0x28] sm:$0xff]
  %v221 = vld [vmem:[%s5 + $0x30] sm:$0xff]
  %v222 = vld [vmem:[%s5 + $0x38] sm:$0xff]
  %v223 = vld [vmem:[%s5 + $0x40] sm:$0xff]
  %v224 = vld [vmem:[%s5 + $0x48] sm:$0xff]
  %v225 = vld [vmem:[%s5 + $0x50] sm:$0xff]
  %v226 = vld [vmem:[%s5 + $0x58] sm:$0xff]
  %v227 = vld [vmem:[%s5 + $0x60] sm:$0xff]
  %v228 = vld [vmem:[%s5 + $0x68] sm:$0xff]
  %v229 = vld [vmem:[%s5 + $0x70] sm:$0xff]
  %v230 = vld [vmem:[%s5 + $0x78] sm:$0xff]
  %v231 = vld [vmem:[%s6] sm:$0xff]
  %v232 = vld [vmem:[%s6 + $0x8] sm:$0xff]
  %v233 = vld [vmem:[%s6 + $0x10] sm:$0xff]
  %v234 = vld [vmem:[%s6 + $0x18] sm:$0xff]
  %vm235 = vcmask 261120
  %v237 = vsel %vm235, %v209, 0
  %v240 = vsel %vm235, %v210, 0
  %v243 = vsel %vm235, %v211, 0
  %v246 = vsel %vm235, %v212, 0
  %v249 = vsel %vm235, %v213, 0
  %v252 = vsel %vm235, %v214, 0
  %254 = vmatprep.subr.mxu0 0.0
  %255 = vmatpush1.msra.mxu0 0.0
  %256 = vmatprep.subr.mxu0 0.0
  %257 = vmatpush1.msra.mxu0 0.0
  %258 = vmatprep.subr.mxu0 0.0
  %259 = vmatpush1.msra.mxu0 0.0
  %260 = vmatprep.subr.mxu0 0.0
  %261 = vmatpush1.msra.mxu0 0.0
  %262 = vmatprep.subr.mxu0 0.0
  %263 = vmatpush1.msra.mxu0 0.0
  %264 = vmatprep.subr.mxu0 0.0
  %265 = vmatpush1.msra.mxu0 0.0
  %266 = vmatprep.subr.mxu0 0.0
  %267 = vmatpush1.msra.mxu0 0.0
  %268 = vmatprep.subr.mxu0 0.0
  %269 = vmatpush1.msra.mxu0 0.0
  %270 = vmatprep.subr.mxu0 0.0
  %271 = vmatpush1.msra.mxu0 0.0
  %272 = vmatprep.subr.mxu0 0.0
  %273 = vmatpush1.msra.mxu0 0.0
  %274 = vmatprep.subr.mxu0 0.0
  %275 = vmatpush1.msra.mxu0 0.0
  %276 = vmatprep.subr.mxu0 0.0
  %277 = vmatpush1.msra.mxu0 0.0
  %278 = vmatprep.subr.mxu0 0.0
  %279 = vmatpush1.msra.mxu0 %v234
  %280 = vmatprep.subr.mxu0 0.0
  %281 = vmatpush1.msra.mxu0 %v233
  %282 = vmatprep.subr.mxu0 0.0
  %283 = vmatpush1.msra.mxu0 %v232
  %284 = vmatprep.subr.mxu0 0.0
  %285 = vmatpush1.msra.mxu0 %v231
  %286 = vmatprep.subr.mxu0 0.0
  %287 = vmatpush2.msra.mxu0 0.0
  %288 = vmatprep.subr.mxu0 0.0
  %289 = vmatpush2.msra.mxu0 0.0
  %290 = vmatprep.subr.mxu0 0.0
  %291 = vmatpush2.msra.mxu0 0.0
  %292 = vmatprep.subr.mxu0 0.0
  %293 = vmatpush2.msra.mxu0 0.0
  %294 = vmatprep.subr.mxu0 0.0
  %295 = vmatpush2.msra.mxu0 0.0
  %296 = vmatprep.subr.mxu0 0.0
  %297 = vmatpush2.msra.mxu0 0.0
  %298 = vmatprep.subr.mxu0 0.0
  %299 = vmatpush2.msra.mxu0 0.0
  %300 = vmatprep.subr.mxu0 0.0
  %301 = vmatpush2.msra.mxu0 0.0
  %302 = vmatprep.subr.mxu0 0.0
  %303 = vmatpush2.msra.mxu0 0.0
  %304 = vmatprep.subr.mxu0 0.0
  %305 = vmatpush2.msra.mxu0 0.0
  %306 = vmatprep.subr.mxu0 0.0
  %307 = vmatpush2.msra.mxu0 0.0
  %308 = vmatprep.subr.mxu0 0.0
  %309 = vmatpush2.msra.mxu0 0.0
  %310 = vmatprep.subr.mxu0 0.0
  %311 = vmatpush2.msra.mxu0 0.0
  %312 = vmatprep.subr.mxu0 0.0
  %313 = vmatpush2.msra.mxu0 0.0
  %314 = vmatprep.subr.mxu0 0.0
  %315 = vmatpush2.msra.mxu0 0.0
  %316 = vmatprep.subr.mxu0 0.0
  %317 = vmatpush2.msra.mxu0 0.0
  %318 = vmatprep.mubr.f32.mxu0 0.0
  %319 = vmatmul.mubr.f32.gmra.mxu0 %v237
  %v320 = vpop.f32.mrf.mxu0
  %v321 = vadd.f32 0.0, %v320
  %v322 = vpop.f32.mrf.mxu0
  %323 = vmatprep.mubr.f32.mxu0 0.0
  %324 = vmatmul.mubr.f32.gmra.mxu0 %v240
  %v325 = vpop.f32.mrf.mxu0
  %v326 = vadd.f32 0.0, %v325
  %v327 = vpop.f32.mrf.mxu0
  %328 = vmatprep.mubr.f32.mxu0 0.0
  %329 = vmatmul.mubr.f32.gmra.mxu0 %v243
  %v330 = vpop.f32.mrf.mxu0
  %v331 = vadd.f32 0.0, %v330
  %v332 = vpop.f32.mrf.mxu0
  %333 = vmatprep.mubr.f32.mxu0 0.0
  %334 = vmatmul.mubr.f32.gmra.mxu0 %v246
  %v335 = vpop.f32.mrf.mxu0
  %v336 = vadd.f32 0.0, %v335
  %v337 = vpop.f32.mrf.mxu0
  %338 = vmatprep.mubr.f32.mxu0 0.0
  %339 = vmatmul.mubr.f32.gmra.mxu0 %v249
  %v340 = vpop.f32.mrf.mxu0
  %v341 = vadd.f32 0.0, %v340
  %v342 = vpop.f32.mrf.mxu0
  %343 = vmatprep.mubr.f32.mxu0 0.0
  %344 = vmatmul.mubr.f32.gmra.mxu0 %v252
  %v345 = vpop.f32.mrf.mxu0
  %v346 = vadd.f32 0.0, %v345
  %v347 = vpop.f32.mrf.mxu0
  %348 = vdwg.mxu0
  %349 = vmatprep.subr.mxu0 0.0
  %350 = vmatpush1.msra.mxu0 %v230
  %351 = vmatprep.subr.mxu0 0.0
  %352 = vmatpush1.msra.mxu0 %v229
  %353 = vmatprep.subr.mxu0 0.0
  %354 = vmatpush1.msra.mxu0 %v228
  %355 = vmatprep.subr.mxu0 0.0
  %356 = vmatpush1.msra.mxu0 %v227
  %357 = vmatprep.subr.mxu0 0.0
  %358 = vmatpush1.msra.mxu0 %v226
  %359 = vmatprep.subr.mxu0 0.0
  %360 = vmatpush1.msra.mxu0 %v225
  %361 = vmatprep.subr.mxu0 0.0
  %362 = vmatpush1.msra.mxu0 %v224
  %363 = vmatprep.subr.mxu0 0.0
  %364 = vmatpush1.msra.mxu0 %v223
  %365 = vmatprep.subr.mxu0 0.0
  %366 = vmatpush1.msra.mxu0 %v222
  %367 = vmatprep.subr.mxu0 0.0
  %368 = vmatpush1.msra.mxu0 %v221
  %369 = vmatprep.subr.mxu0 0.0
  %370 = vmatpush1.msra.mxu0 %v220
  %371 = vmatprep.subr.mxu0 0.0
  %372 = vmatpush1.msra.mxu0 %v219
  %373 = vmatprep.subr.mxu0 0.0
  %374 = vmatpush1.msra.mxu0 %v218
  %375 = vmatprep.subr.mxu0 0.0
  %376 = vmatpush1.msra.mxu0 %v217
  %377 = vmatprep.subr.mxu0 0.0
  %378 = vmatpush1.msra.mxu0 %v216
  %379 = vmatprep.subr.mxu0 0.0
  %380 = vmatpush1.msra.mxu0 %v215
  %381 = vmatprep.subr.mxu0 0.0
  %382 = vmatpush2.msra.mxu0 0.0
  %383 = vmatprep.subr.mxu0 0.0
  %384 = vmatpush2.msra.mxu0 0.0
  %385 = vmatprep.subr.mxu0 0.0
  %386 = vmatpush2.msra.mxu0 0.0
  %387 = vmatprep.subr.mxu0 0.0
  %388 = vmatpush2.msra.mxu0 0.0
  %389 = vmatprep.subr.mxu0 0.0
  %390 = vmatpush2.msra.mxu0 0.0
  %391 = vmatprep.subr.mxu0 0.0
  %392 = vmatpush2.msra.mxu0 0.0
  %393 = vmatprep.subr.mxu0 0.0
  %394 = vmatpush2.msra.mxu0 0.0
  %395 = vmatprep.subr.mxu0 0.0
  %396 = vmatpush2.msra.mxu0 0.0
  %397 = vmatprep.subr.mxu0 0.0
  %398 = vmatpush2.msra.mxu0 0.0
  %399 = vmatprep.subr.mxu0 0.0
  %400 = vmatpush2.msra.mxu0 0.0
  %401 = vmatprep.subr.mxu0 0.0
  %402 = vmatpush2.msra.mxu0 0.0
  %403 = vmatprep.subr.mxu0 0.0
  %404 = vmatpush2.msra.mxu0 0.0
  %405 = vmatprep.subr.mxu0 0.0
  %406 = vmatpush2.msra.mxu0 0.0
  %407 = vmatprep.subr.mxu0 0.0
  %408 = vmatpush2.msra.mxu0 0.0
  %409 = vmatprep.subr.mxu0 0.0
  %410 = vmatpush2.msra.mxu0 0.0
  %411 = vmatprep.subr.mxu0 0.0
  %412 = vmatpush2.msra.mxu0 0.0
  %413 = vmatprep.mubr.f32.mxu0 0.0
  %414 = vmatmul.mubr.f32.gmra.mxu0 %v185
  %v415 = vpop.f32.mrf.mxu0
  %v416 = vadd.f32 %v321, %v415
  %v417 = vpop.f32.mrf.mxu0
  %418 = vmatprep.mubr.f32.mxu0 0.0
  %419 = vmatmul.mubr.f32.gmra.mxu0 %v186
  %v420 = vpop.f32.mrf.mxu0
  %v421 = vadd.f32 %v326, %v420
  %v422 = vpop.f32.mrf.mxu0
  %423 = vmatprep.mubr.f32.mxu0 0.0
  %424 = vmatmul.mubr.f32.gmra.mxu0 %v187
  %v425 = vpop.f32.mrf.mxu0
  %v426 = vadd.f32 %v331, %v425
  %v427 = vpop.f32.mrf.mxu0
  %428 = vmatprep.mubr.f32.mxu0 0.0
  %429 = vmatmul.mubr.f32.gmra.mxu0 %v188
  %v430 = vpop.f32.mrf.mxu0
  %v431 = vadd.f32 %v336, %v430
  %v432 = vpop.f32.mrf.mxu0
  %433 = vmatprep.mubr.f32.mxu0 0.0
  %434 = vmatmul.mubr.f32.gmra.mxu0 %v189
  %v435 = vpop.f32.mrf.mxu0
  %v436 = vadd.f32 %v341, %v435
  %v437 = vpop.f32.mrf.mxu0
  %438 = vmatprep.mubr.f32.mxu0 0.0
  %439 = vmatmul.mubr.f32.gmra.mxu0 %v190
  %v440 = vpop.f32.mrf.mxu0
  %v441 = vadd.f32 %v346, %v440
  %v442 = vpop.f32.mrf.mxu0
  %443 = vdwg.mxu0
  %v444 = vld [vmem:[%s7] sm:$0x1]
  %v446 = vlaneseq
  %v447 = vshrl.u32 %v446, 7
  %v448 = vsub.s32 0, %v447
  %v449 = vrot.slane %v444, %v448
  %v451 = vadd.f32 %v416, %v449
  %v452 = vadd.f32 %v421, %v449
  %v453 = vadd.f32 %v426, %v449
  %v454 = vadd.f32 %v431, %v449
  %v455 = vadd.f32 %v436, %v449
  %v456 = vadd.f32 %v441, %v449
  %vm457 = vcmp.ge.f32.partialorder %v451, 0.0
  %vm458 = vcmp.ge.f32.partialorder %v452, 0.0
  %vm459 = vcmp.ge.f32.partialorder %v453, 0.0
  %vm460 = vcmp.ge.f32.partialorder %v454, 0.0
  %vm461 = vcmp.ge.f32.partialorder %v455, 0.0
  %vm462 = vcmp.ge.f32.partialorder %v456, 0.0
  %v463 = vmul.f32 %v178, %v451
  %v464 = vmul.f32 %v178, %v452
  %v465 = vmul.f32 %v178, %v453
  %v466 = vmul.f32 %v178, %v454
  %v467 = vmul.f32 %v178, %v455
  %v468 = vmul.f32 %v178, %v456
  %v469 = vsel %vm457, %v451, %v463
  %v470 = vsel %vm458, %v452, %v464
  %v471 = vsel %vm459, %v453, %v465
  %v472 = vsel %vm460, %v454, %v466
  %v473 = vsel %vm461, %v455, %v467
  %v474 = vsel %vm462, %v456, %v468
  %v475 = vld [vmem:[%s8] sm:$0xff]
  %v476 = vld [vmem:[%s8 + $0x8] sm:$0xff]
  %v477 = vld [vmem:[%s8 + $0x10] sm:$0xff]
  %v478 = vld [vmem:[%s8 + $0x18] sm:$0xff]
  %v479 = vld [vmem:[%s9] sm:$0x1]
  %v481 = vlaneseq
  %v482 = vshrl.u32 %v481, 7
  %v483 = vsub.s32 0, %v482
  %v484 = vrot.slane %v479, %v483
  %v487 = vsel %vm235, %v469, 0
  %v490 = vsel %vm235, %v470, 0
  %v493 = vsel %vm235, %v471, 0
  %v496 = vsel %vm235, %v472, 0
  %v499 = vsel %vm235, %v473, 0
  %v502 = vsel %vm235, %v474, 0
  %504 = vmatprep.subr.mxu0 0.0
  %505 = vmatpush1.msra.mxu0 0.0
  %506 = vmatprep.subr.mxu0 0.0
  %507 = vmatpush1.msra.mxu0 0.0
  %508 = vmatprep.subr.mxu0 0.0
  %509 = vmatpush1.msra.mxu0 0.0
  %510 = vmatprep.subr.mxu0 0.0
  %511 = vmatpush1.msra.mxu0 0.0
  %512 = vmatprep.subr.mxu0 0.0
  %513 = vmatpush1.msra.mxu0 0.0
  %514 = vmatprep.subr.mxu0 0.0
  %515 = vmatpush1.msra.mxu0 0.0
  %516 = vmatprep.subr.mxu0 0.0
  %517 = vmatpush1.msra.mxu0 0.0
  %518 = vmatprep.subr.mxu0 0.0
  %519 = vmatpush1.msra.mxu0 0.0
  %520 = vmatprep.subr.mxu0 0.0
  %521 = vmatpush1.msra.mxu0 0.0
  %522 = vmatprep.subr.mxu0 0.0
  %523 = vmatpush1.msra.mxu0 0.0
  %524 = vmatprep.subr.mxu0 0.0
  %525 = vmatpush1.msra.mxu0 0.0
  %526 = vmatprep.subr.mxu0 0.0
  %527 = vmatpush1.msra.mxu0 0.0
  %528 = vmatprep.subr.mxu0 0.0
  %529 = vmatpush1.msra.mxu0 %v478
  %530 = vmatprep.subr.mxu0 0.0
  %531 = vmatpush1.msra.mxu0 %v477
  %532 = vmatprep.subr.mxu0 0.0
  %533 = vmatpush1.msra.mxu0 %v476
  %534 = vmatprep.subr.mxu0 0.0
  %535 = vmatpush1.msra.mxu0 %v475
  %536 = vmatprep.subr.mxu0 0.0
  %537 = vmatpush2.msra.mxu0 0.0
  %538 = vmatprep.subr.mxu0 0.0
  %539 = vmatpush2.msra.mxu0 0.0
  %540 = vmatprep.subr.mxu0 0.0
  %541 = vmatpush2.msra.mxu0 0.0
  %542 = vmatprep.subr.mxu0 0.0
  %543 = vmatpush2.msra.mxu0 0.0
  %544 = vmatprep.subr.mxu0 0.0
  %545 = vmatpush2.msra.mxu0 0.0
  %546 = vmatprep.subr.mxu0 0.0
  %547 = vmatpush2.msra.mxu0 0.0
  %548 = vmatprep.subr.mxu0 0.0
  %549 = vmatpush2.msra.mxu0 0.0
  %550 = vmatprep.subr.mxu0 0.0
  %551 = vmatpush2.msra.mxu0 0.0
  %552 = vmatprep.subr.mxu0 0.0
  %553 = vmatpush2.msra.mxu0 0.0
  %554 = vmatprep.subr.mxu0 0.0
  %555 = vmatpush2.msra.mxu0 0.0
  %556 = vmatprep.subr.mxu0 0.0
  %557 = vmatpush2.msra.mxu0 0.0
  %558 = vmatprep.subr.mxu0 0.0
  %559 = vmatpush2.msra.mxu0 0.0
  %560 = vmatprep.subr.mxu0 0.0
  %561 = vmatpush2.msra.mxu0 0.0
  %562 = vmatprep.subr.mxu0 0.0
  %563 = vmatpush2.msra.mxu0 0.0
  %564 = vmatprep.subr.mxu0 0.0
  %565 = vmatpush2.msra.mxu0 0.0
  %566 = vmatprep.subr.mxu0 0.0
  %567 = vmatpush2.msra.mxu0 0.0
  %568 = vmatprep.mubr.f32.mxu0 0.0
  %569 = vmatmul.mubr.f32.gmra.mxu0 %v487
  %v570 = vpop.f32.mrf.mxu0
  %v571 = vadd.f32 %v484, %v570
  %v572 = vpop.f32.mrf.mxu0
  %573 = vmatprep.mubr.f32.mxu0 0.0
  %574 = vmatmul.mubr.f32.gmra.mxu0 %v490
  %v575 = vpop.f32.mrf.mxu0
  %v576 = vadd.f32 %v484, %v575
  %v577 = vpop.f32.mrf.mxu0
  %578 = vmatprep.mubr.f32.mxu0 0.0
  %579 = vmatmul.mubr.f32.gmra.mxu0 %v493
  %v580 = vpop.f32.mrf.mxu0
  %v581 = vadd.f32 %v484, %v580
  %v582 = vpop.f32.mrf.mxu0
  %583 = vmatprep.mubr.f32.mxu0 0.0
  %584 = vmatmul.mubr.f32.gmra.mxu0 %v496
  %v585 = vpop.f32.mrf.mxu0
  %v586 = vadd.f32 %v484, %v585
  %v587 = vpop.f32.mrf.mxu0
  %588 = vmatprep.mubr.f32.mxu0 0.0
  %589 = vmatmul.mubr.f32.gmra.mxu0 %v499
  %v590 = vpop.f32.mrf.mxu0
  %v591 = vadd.f32 %v484, %v590
  %v592 = vpop.f32.mrf.mxu0
  %593 = vmatprep.mubr.f32.mxu0 0.0
  %594 = vmatmul.mubr.f32.gmra.mxu0 %v502
  %v595 = vpop.f32.mrf.mxu0
  %v596 = vadd.f32 %v484, %v595
  %v597 = vpop.f32.mrf.mxu0
  %598 = vdwg.mxu0
  %599 = vst [vmem:[%s10] sm:$0xff] %v571
  %600 = vst [vmem:[%s10 + $0x8] sm:$0xff] %v576
  %601 = vst [vmem:[%s10 + $0x10] sm:$0xff] %v581
  %602 = vst [vmem:[%s10 + $0x18] sm:$0xff] %v586
  %603 = vst [vmem:[%s10 + $0x20] sm:$0xff] %v591
  %604 = vst [vmem:[%s10 + $0x28] sm:$0xff] %v596
  // Predicated region
  $region42: #{combiner_forward_batched.1} parent=0 // pred_check
    _
  $region43: #{combiner_forward_batched.1} parent=0 // pred_check_branch
    %606 = sbr.rel (0) target = $region45
  $region44: #{combiner_forward_batched.1} parent=0 // pred_region
    _
  $region45: #{combiner_forward_batched.1} parent=0 // pred_fallthru
    _
  // Predicated region
  $region46: #{combiner_forward_batched.1} parent=0 // pred_check
    _
  $region47: #{combiner_forward_batched.1} parent=0 // pred_check_branch
    %608 = sbr.rel (0) target = $region49
  $region48: #{combiner_forward_batched.1} parent=0 // pred_region
    _
  $region49: #{combiner_forward_batched.1} parent=0 // pred_fallthru
    _

</llo_original>
